<compile_context>
chip_gen: v5e
topology: v5e:2x2
jax: 0.10.0
libtpu: 0.0.40
codegen_flags: <defaults>
</compile_context>

<pallas_src>
import functools

import jax
import jax.numpy as jnp
from jax.experimental import pallas as pl
from jax.experimental.pallas import tpu as pltpu

BLOCK_ROWS = 1024            # max rows per block (4 MiB at LANE=1024, f32)
_LANE_CHOICES = (1024, 512, 256, 128)
_PALLAS_MIN_BYTES = 4 << 20  # below ~4 MiB, XLA's fused multiply wins; skip Pallas


def _scale_kernel(h_ref, x_ref, o_ref):
    # h_ref: SMEM int32 scalar (shape (1,)) via scalar prefetch.
    # x_ref / o_ref: (block_rows, lane) VMEM tiles.
    # Matches torch: h is cast to x.dtype, then broadcast-multiplied.
    o_ref[...] = x_ref[...] * h_ref[0].astype(x_ref.dtype)


def _pick_lane(n):
    """Largest lane width (multiple of 128) that divides n exactly, else None."""
    for lane in _LANE_CHOICES:
        if n % lane == 0:
            return lane
    return None


def _pallas_scale(x, h, lane):
    """y = x * h (h scalar int32) via a lane-dense tiled Pallas kernel.

    No padding, no slicing: x.size is an exact multiple of `lane`, the 2-D view
    is a free reshape, and the result reshapes straight back to x.shape.
    """
    orig_shape = x.shape
    n = x.size
    itemsize = jnp.dtype(x.dtype).itemsize

    rows = n // lane
    # Dtype-aware sublane multiple: f32 -> 8, bf16 -> 16, int8/fp8 -> 32.
    unit = 8 * max(1, 4 // itemsize)

    if rows < 2 * unit:
        # Tiny (demo/forced) path: one block equal to the full array dims,
        # which is exempt from the (8,128) / packed-min-tile constraints.
        block_rows = rows
    else:
        # Keep at least 2 grid steps so both v7x TensorCores get work; cap at
        # BLOCK_ROWS (4 MiB f32 blocks) for large inputs.  Ragged last block
        # (rows % block_rows != 0) is clipped by Pallas boundary handling.
        half = ((rows // 2) // unit) * unit
        block_rows = max(unit, min(BLOCK_ROWS, half))

    grid = (pl.cdiv(rows, block_rows),)

    x2 = x.reshape(rows, lane)          # free: contiguous row-major view
    h_smem = jnp.reshape(h, (1,))       # scalar-prefetch operand (SMEM, int32)

    grid_spec = pltpu.PrefetchScalarGridSpec(
        num_scalar_prefetch=1,
        grid=grid,
        in_specs=[pl.BlockSpec((block_rows, lane), lambda i, h_ref: (i, 0))],
        out_specs=pl.BlockSpec((block_rows, lane), lambda i, h_ref: (i, 0)),
    )

    y2 = pl.pallas_call(
        _scale_kernel,
        out_shape=jax.ShapeDtypeStruct((rows, lane), x.dtype),
        grid_spec=grid_spec,
        compiler_params=pltpu.CompilerParams(
            dimension_semantics=("parallel",),
            vmem_limit_bytes=32 * 1024 * 1024,
        ),
        cost_estimate=pl.CostEstimate(
            flops=n, transcendentals=0, bytes_accessed=2 * n * itemsize),
    )(h_smem, x2)

    return y2.reshape(orig_shape)       # free: same element count, contiguous


@functools.partial(jax.jit, static_argnames=("first_value", "force_pallas"))
def dummy_recurrent_forward(x, h=None, *, first_value: int = 1,
                            force_pallas: bool = False):
    """Returns (x * h, h + 1), matching DummyRecurrentNet.forward."""
    if h is None:
        h = jnp.asarray(first_value, dtype=jnp.int32)
    h = jnp.asarray(h, dtype=jnp.int32)

    n = x.size
    n_bytes = n * jnp.dtype(x.dtype).itemsize
    lane = _pick_lane(n)

    use_pallas = (lane is not None) and (force_pallas or n_bytes >= _PALLAS_MIN_BYTES)
    if use_pallas:
        y = _pallas_scale(x, h, lane)
    else:
        # Small or non-lane-divisible inputs: XLA's fused scalar-broadcast
        # multiply is already at HBM roofline and fuses with producers/consumers.
        y = x * h.astype(x.dtype)

    h_next = h + 1  # trivial scalar glue, stays in plain JAX
    return y, h_next


if __name__ == "__main__":
    key = jax.random.PRNGKey(0)
    # Small NCHW feature map: batch=2, C=4, 16x16 -> n=2048 (single full-dims block).
    x = jax.random.normal(key, (2, 4, 16, 16), dtype=jnp.float32)

    # Pallas path (forced so the kernel itself is exercised at demo size).
    y1, h1 = dummy_recurrent_forward(x, first_value=1, force_pallas=True)
    # Recurrent step: feed h back in.
    y2, h2 = dummy_recurrent_forward(x, h1, first_value=1, force_pallas=True)
    # Auto path at this size takes the plain-JAX fast path.
    y3, h3 = dummy_recurrent_forward(x, first_value=1)

    # Mid-size slab exercising the multi-block (grid >= 2, both-TC) pipeline path.
    xb = jax.random.normal(jax.random.PRNGKey(1), (8, 8, 64, 128), dtype=jnp.float32)
    yb, hb = dummy_recurrent_forward(xb, jnp.asarray(3, jnp.int32), force_pallas=True)

    jax.block_until_ready((y1, h1, y2, h2, y3, h3, yb, hb))

    # Correctness checks against the reference semantics.
    assert jnp.allclose(y1, x * 1.0)
    assert int(h1) == 2
    assert jnp.allclose(y2, x * 2.0)
    assert int(h2) == 3
    assert jnp.allclose(y3, x * 1.0)
    assert int(h3) == 2
    assert jnp.allclose(yb, xb * 3.0)
    assert int(hb) == 4

    print("KERNEL_OK")
</pallas_src>

<mosaic_0001>
module attributes {stable_mosaic.version = 11 : i64} {
  func.func @_scale_kernel(%arg0: i32, %arg1: memref<1xi32, #tpu.memory_space<smem>>, %arg2: memref<2x1024xf32, #tpu.memory_space<vmem>>, %arg3: memref<2x1024xf32, #tpu.memory_space<vmem>>) attributes {dimension_semantics = [#tpu.dimension_semantics<parallel>], iteration_bounds = array<i64: 1>, scalar_prefetch = 1 : i64, scratch_operands = 0 : i64, tpu.core_type = #tpu.core_type<tc>, window_params = [{transform_indices = @transform_0, window_bounds = array<i64: 2, 1024>}, {transform_indices = @transform_1, window_bounds = array<i64: 2, 1024>}]} {
    %c0 = arith.constant 0 : index
    %c0_0 = arith.constant 0 : index
    %0 = vector.load %arg2[%c0, %c0_0] : memref<2x1024xf32, #tpu.memory_space<vmem>>, vector<2x1024xf32>
    %c0_1 = arith.constant 0 : index
    %1 = memref.load %arg1[%c0_1] : memref<1xi32, #tpu.memory_space<smem>>
    %2 = arith.sitofp %1 : i32 to f32
    %3 = vector.broadcast %2 : f32 to vector<2x1024xf32>
    %4 = arith.mulf %0, %3 : vector<2x1024xf32>
    %c0_2 = arith.constant 0 : index
    %c0_3 = arith.constant 0 : index
    %5 = vector.load %arg3[%c0_2, %c0_3] : memref<2x1024xf32, #tpu.memory_space<vmem>>, vector<2x1024xf32>
    tpu.vector_store %arg3[%c0_2, %c0_3], %4 {strides = array<i32>} : memref<2x1024xf32, #tpu.memory_space<vmem>>, vector<2x1024xf32>,
    return
  }
  func.func @transform_0(%arg0: i32, %arg1: memref<1xi32, #tpu.memory_space<smem>>) -> (i32, i32) {
    %c0_i32 = arith.constant 0 : i32
    %c0_i32_0 = arith.constant 0 : i32
    return %arg0, %c0_i32 : i32, i32
  }
  func.func @transform_1(%arg0: i32, %arg1: memref<1xi32, #tpu.memory_space<smem>>) -> (i32, i32) {
    %c0_i32 = arith.constant 0 : i32
    %c0_i32_0 = arith.constant 0 : i32
    return %arg0, %c0_i32 : i32, i32
  }
}

</mosaic_0001>

<llo_original>
// kernel: dummy_recurrent_forward.1
$region0: #{dummy_recurrent_forward.1}
  #allocation0 [shape = 'u32[]', space=smem, size = 0x4, offset = 0x4, fixed_abs, tag = 'smem constant byte address 0x4 - core index']
  #allocation1 [shape = 'u32[72,128]{1,0:T(1,128)}', space=vmem, size = 0x9000, scoped, tag = 'internal scratch']
  #allocation2 [shape = 's32[1]{0}', space=sflag, size = 0x4, scoped, tag = 'scoped memory for dummy_recurrent_forward.1']
  #allocation3 [shape = 's32[1]{0:T(128)S(6)}', space=smem, size = 0x200, scoped, tag = 'prefetched SMEM operand 0']
  %s0 = inlined_call_operand.<no memory space> [shape: s32[1], index: 0, kind: input, shape index: {}]
  %s1 = inlined_call_operand.vmem [shape: f32[2,1024], index: 1, kind: input, shape index: {}]
  %s2 = inlined_call_operand.vmem [shape: f32[2,1024], index: 2, kind: output, shape index: {}]
  %s3 = sld [smem:[#allocation0]]
  $region14: #{dummy_recurrent_forward.1} parent=0
    _
  %s5 = ssub.s32 1, %s3
  %s6 = scalar_select 0, %s5, %s3
  %7 = sst [smem:[#allocation3]] %s0
  // Predicated region
  $region2: #{dummy_recurrent_forward.1} parent=0 // pred_check
    _
  $region3: #{dummy_recurrent_forward.1} parent=0 // pred_check_branch
    %9 = sbr.rel (0) target = $region5
  $region4: #{dummy_recurrent_forward.1} parent=0 // pred_region
    _
  $region5: #{dummy_recurrent_forward.1} parent=0 // pred_fallthru
    _
  %v10 = vld [vmem:[%s1] sm:$0xff]
  %v11 = vld [vmem:[%s1 + $0x8] sm:$0xff]
  %s12 = sld [smem:[#allocation3]]
  %s13 = scvt.s32.f32 %s12
  %v14 = vstv %s13
  %v15 = vmul.f32 %v10, %v14
  %v16 = vmul.f32 %v11, %v14
  %17 = vst [vmem:[%s2] sm:$0xff] %v15
  %18 = vst [vmem:[%s2 + $0x8] sm:$0xff] %v16
  // Predicated region
  $region6: #{dummy_recurrent_forward.1} parent=0 // pred_check
    _
  $region7: #{dummy_recurrent_forward.1} parent=0 // pred_check_branch
    %20 = sbr.rel (0) target = $region9
  $region8: #{dummy_recurrent_forward.1} parent=0 // pred_region
    _
  $region9: #{dummy_recurrent_forward.1} parent=0 // pred_fallthru
    _
  // Predicated region
  $region10: #{dummy_recurrent_forward.1} parent=0 // pred_check
    _
  $region11: #{dummy_recurrent_forward.1} parent=0 // pred_check_branch
    %22 = sbr.rel (0) target = $region13
  $region12: #{dummy_recurrent_forward.1} parent=0 // pred_region
    _
  $region13: #{dummy_recurrent_forward.1} parent=0 // pred_fallthru
    _

</llo_original>
